<compile_context>
chip_gen: v7x
topology: tpu7x:2x2x1
jax: 0.10.0
libtpu: 0.0.40
codegen_flags: <defaults>
</compile_context>

<pallas_src>
import jax
import jax.numpy as jnp
from jax.experimental import pallas as pl
from jax.experimental.pallas import tpu as pltpu

HIDDEN = 768                    # BERT hidden size expected by nn.Linear(768, 1)
TILE_BYTES = 4 * 1024 * 1024    # per-buffer VMEM budget for the feature tile


def _round_up(n, m):
    return ((n + m - 1) // m) * m


def _head_kernel(x_ref, w_ref, b_ref, o_ref):
    # x_ref: [TB, H] VMEM (input dtype), w_ref: [1, H] VMEM f32,
    # b_ref: (1, 1) SMEM f32, o_ref: [TB, 1] VMEM f32
    x = x_ref[...].astype(jnp.float32)          # explicit f32 promotion (v5e-safe)
    w = w_ref[...]                              # lane-dense weight row, broadcasts
    logits = jnp.sum(x * w, axis=-1, keepdims=True) + b_ref[0, 0]
    o_ref[...] = jax.nn.sigmoid(logits)


def bias_score_classifier_head(x, w, b):
    """Classifier head: sigmoid(x @ w.T + b).

    x: [B, H] features (f32 or bf16), w: [1, H] (PyTorch nn.Linear layout),
    b: [1].  Returns [B, 1] f32 scores.
    """
    B, H = x.shape
    assert w.shape[-1] == H, "weight / feature hidden-dim mismatch"

    # Batch tile: as many rows as fit the VMEM budget, multiple of 8 sublanes,
    # never more than the (8-rounded) batch itself.
    bytes_per_row = H * jnp.dtype(x.dtype).itemsize
    tb_budget = max(8, (TILE_BYTES // bytes_per_row) // 8 * 8)
    TB = min(tb_budget, _round_up(max(B, 1), 8))
    grid = (pl.cdiv(B, TB),)

    w_row = w.reshape(1, H).astype(jnp.float32)        # lane-dense [1, H]
    b_smem = b.reshape(1, 1).astype(jnp.float32)       # scalar in SMEM

    return pl.pallas_call(
        _head_kernel,
        out_shape=jax.ShapeDtypeStruct((B, 1), jnp.float32),
        grid=grid,
        in_specs=[
            pl.BlockSpec((TB, H), lambda i: (i, 0)),            # features (tiled)
            pl.BlockSpec((1, H), lambda i: (0, 0)),             # weight (no re-DMA)
            pl.BlockSpec(memory_space=pltpu.MemorySpace.SMEM),  # bias scalar
        ],
        out_specs=pl.BlockSpec((TB, 1), lambda i: (i, 0)),
        compiler_params=pltpu.CompilerParams(
            dimension_semantics=("parallel",),
        ),
    )(x, w_row, b_smem)


# TODO(synk): the BERT language model (self.lm) has no Pallas equivalent here;
# the kernel consumes pooled [B, 768] features directly (as the classifier does).


if __name__ == "__main__":
    key = jax.random.PRNGKey(0)
    k_x, k_w, k_b = jax.random.split(key, 3)

    B = 16
    # Deterministic "pooled BERT features" (bf16, as typically produced by BERT).
    x = jax.random.normal(k_x, (B, HIDDEN), dtype=jnp.float32).astype(jnp.bfloat16)

    # Deterministic classifier parameters (nn.Linear(768, 1) shapes / init range).
    bound = 1.0 / jnp.sqrt(jnp.float32(HIDDEN))
    w = jax.random.uniform(k_w, (1, HIDDEN), minval=-bound, maxval=bound,
                           dtype=jnp.float32)
    b = jax.random.uniform(k_b, (1,), minval=-bound, maxval=bound,
                           dtype=jnp.float32)

    out = bias_score_classifier_head(x, w, b)
    out = jax.block_until_ready(out)

    # Reference in plain JAX (same f32 upcast of the bf16 features).
    ref = jax.nn.sigmoid(x.astype(jnp.float32) @ w.T + b)
    assert out.shape == (B, 1)
    assert jnp.allclose(out, ref, atol=1e-5, rtol=1e-5)

    print("KERNEL_OK")
</pallas_src>

<mosaic_0001>
module attributes {stable_mosaic.version = 11 : i64} {
  func.func @_head_kernel(%arg0: i32, %arg1: memref<16x768xbf16, #tpu.memory_space<vmem>>, %arg2: memref<1x768xf32, #tpu.memory_space<vmem>>, %arg3: memref<1x1xf32, #tpu.memory_space<smem>>, %arg4: memref<16x1xf32, #tpu.memory_space<vmem>>) attributes {dimension_semantics = [#tpu.dimension_semantics<parallel>], iteration_bounds = array<i64: 1>, scalar_prefetch = 0 : i64, scratch_operands = 0 : i64, tpu.core_type = #tpu.core_type<tc>, window_params = [{transform_indices = @transform_0, window_bounds = array<i64: 16, 768>}, {pipeline_mode = #tpu.pipeline_mode<synchronous>, transform_indices = @transform_1, window_bounds = array<i64: 1, 768>}, {transform_indices = @transform_2, window_bounds = array<i64: 1, 1>}, {transform_indices = @transform_3, window_bounds = array<i64: 16, 1>}]} {
    %c0 = arith.constant 0 : index
    %c0_0 = arith.constant 0 : index
    %0 = vector.load %arg1[%c0, %c0_0] : memref<16x768xbf16, #tpu.memory_space<vmem>>, vector<16x768xbf16>
    %1 = arith.extf %0 : vector<16x768xbf16> to vector<16x768xf32>
    %c0_1 = arith.constant 0 : index
    %c0_2 = arith.constant 0 : index
    %2 = vector.load %arg2[%c0_1, %c0_2] : memref<1x768xf32, #tpu.memory_space<vmem>>, vector<1x768xf32>
    %3 = vector.broadcast %2 : vector<1x768xf32> to vector<16x768xf32>
    %4 = arith.mulf %1, %3 : vector<16x768xf32>
    %cst = arith.constant dense<0.000000e+00> : vector<16xf32>
    %5 = vector.multi_reduction <add>, %4, %cst [1] : vector<16x768xf32> to vector<16xf32>
    %6 = vector.shape_cast %5 : vector<16xf32> to vector<16x1xf32>
    %c0_3 = arith.constant 0 : index
    %c0_4 = arith.constant 0 : index
    %7 = memref.load %arg3[%c0_3, %c0_4] : memref<1x1xf32, #tpu.memory_space<smem>>
    %8 = vector.broadcast %7 : f32 to vector<16x1xf32>
    %9 = arith.addf %6, %8 : vector<16x1xf32>
    %10 = arith.negf %9 : vector<16x1xf32>
    %11 = math.exp %10 : vector<16x1xf32>
    %cst_5 = arith.constant 1.000000e+00 : f32
    %12 = vector.broadcast %cst_5 : f32 to vector<16x1xf32>
    %13 = arith.addf %12, %11 : vector<16x1xf32>
    %14 = arith.divf %12, %13 : vector<16x1xf32>
    %c0_6 = arith.constant 0 : index
    %c0_7 = arith.constant 0 : index
    %15 = vector.load %arg4[%c0_6, %c0_7] : memref<16x1xf32, #tpu.memory_space<vmem>>, vector<16x1xf32>
    tpu.vector_store %arg4[%c0_6, %c0_7], %14 {strides = array<i32>} : memref<16x1xf32, #tpu.memory_space<vmem>>, vector<16x1xf32>,
    return
  }
  func.func @transform_0(%arg0: i32) -> (i32, i32) {
    %c0_i32 = arith.constant 0 : i32
    %c0_i32_0 = arith.constant 0 : i32
    return %arg0, %c0_i32 : i32, i32
  }
  func.func @transform_1(%arg0: i32) -> (i32, i32) {
    %c0_i32 = arith.constant 0 : i32
    %c0_i32_0 = arith.constant 0 : i32
    %c0_i32_1 = arith.constant 0 : i32
    return %c0_i32, %c0_i32_0 : i32, i32
  }
  func.func @transform_2(%arg0: i32) -> (i32, i32) {
    %c0_i32 = arith.constant 0 : i32
    %c0_i32_0 = arith.constant 0 : i32
    %c0_i32_1 = arith.constant 0 : i32
    return %c0_i32, %c0_i32_0 : i32, i32
  }
  func.func @transform_3(%arg0: i32) -> (i32, i32) {
    %c0_i32 = arith.constant 0 : i32
    %c0_i32_0 = arith.constant 0 : i32
    return %arg0, %c0_i32 : i32, i32
  }
}

</mosaic_0001>

<llo_original>
// kernel: tpu_custom_call.1
$region0: #{tpu_custom_call.1}
  #allocation0 [shape = 'u32[]', space=smem, size = 0x4, offset = 0x4, fixed_abs, tag = 'smem constant byte address 0x4 - core index']
  #allocation1 [shape = 'u32[144,128]{1,0:T(1,128)}', space=vmem, size = 0x12000, scoped, tag = 'internal scratch']
  #allocation2 [shape = 'f32[1,1]{1,0:T(1,128)S(6)}', space=smem, size = 0x200, scoped, tag = 'scoped memory for tpu_custom_call.1']
  %s0 = inlined_call_operand.hbm [shape: bf16[16,768], index: 0, kind: input, shape index: {}]
  %s1 = inlined_call_operand.vmem [shape: f32[1,768], index: 1, kind: input, shape index: {}]
  %s2 = inlined_call_operand.<no memory space> [shape: f32[1,1], index: 2, kind: input, shape index: {}]
  %s3 = inlined_call_operand.vmem [shape: f32[16,1], index: 3, kind: output, shape index: {}]
  %s4 = sld [smem:[#allocation0]]
  $region26: #{tpu_custom_call.1} parent=0
    _
  %s6 = ssub.s32 1, %s4
  %s7 = scalar_select 0, %s6, %s4
  %8 = sst [smem:[#allocation2]] %s2
  $region1: #{tpu_custom_call.1} parent=0
    #allocation3 [shape = 'u8[24576]{0}', space=vmem, size = 0x6000, scoped, tag = 'input window, operand 0, single buffered']
    #allocation4 [shape = 's32[1]{0}', space=sflag, size = 0x4, scoped, tag = 'scoped memory for tpu_custom_call.1']
    %9 = vsyncpa [#allocation4], 0
    // Predicated region
    $region2: #{tpu_custom_call.1} parent=1 // pred_check
      _
    $region3: #{tpu_custom_call.1} parent=1 // pred_check_branch
      %11 = sbr.rel (0) target = $region5
    $region4: #{tpu_custom_call.1} parent=1 // pred_region
      %s13 = ssub.s32 768, 768
      %14 = vsyncadd [#allocation4], %s13
      %s15 = sshll.u32 [#allocation3], 4
      %s16 = int_to_ptr.vmem [resolvable:$true] %s15
      %21 = dma.hbm_to_vmem [thread:$0]  %s0, 768, %s16, [#allocation4], 384, 384, 24
    $region5: #{tpu_custom_call.1} parent=1 // pred_fallthru
      _
    // Predicated region
    $region6: #{tpu_custom_call.1} parent=1 // pred_check
      _
    $region7: #{tpu_custom_call.1} parent=1 // pred_check_branch
      %23 = sbr.rel (0) target = $region9
    $region8: #{tpu_custom_call.1} parent=1 // pred_region
      _
    $region9: #{tpu_custom_call.1} parent=1 // pred_fallthru
      _
    // Predicated region
    $region10: #{tpu_custom_call.1} parent=1 // pred_check
      _
    $region11: #{tpu_custom_call.1} parent=1 // pred_check_branch
      %25 = sbr.rel (0) target = $region13
    $region12: #{tpu_custom_call.1} parent=1 // pred_region
      _
    $region13: #{tpu_custom_call.1} parent=1 // pred_fallthru
      _
    // Predicated region
    $region14: #{tpu_custom_call.1} parent=1 // pred_check
      _
    $region15: #{tpu_custom_call.1} parent=1 // pred_check_branch
      %27 = sbr.rel (0) target = $region17
    $region16: #{tpu_custom_call.1} parent=1 // pred_region
      %28 = dma.done [#allocation4], 768
    $region17: #{tpu_custom_call.1} parent=1 // pred_fallthru
      _
    %v29 = vld [vmem:[#allocation3] sm:$0xff]
    %v30 = vld [vmem:[#allocation3 + $0x8] sm:$0xff]
    %v31 = vld [vmem:[#allocation3 + $0x10] sm:$0xff]
    %v32 = vld [vmem:[#allocation3 + $0x18] sm:$0xff]
    %v33 = vld [vmem:[#allocation3 + $0x20] sm:$0xff]
    %v34 = vld [vmem:[#allocation3 + $0x28] sm:$0xff]
    %v35 = vunpack.c.l.bf16 %v29
    %v36 = vunpack.c.h.bf16 %v29
    %v37 = vunpack.c.l.bf16 %v30
    %v38 = vunpack.c.h.bf16 %v30
    %v39 = vunpack.c.l.bf16 %v31
    %v40 = vunpack.c.h.bf16 %v31
    %v41 = vunpack.c.l.bf16 %v32
    %v42 = vunpack.c.h.bf16 %v32
    %v43 = vunpack.c.l.bf16 %v33
    %v44 = vunpack.c.h.bf16 %v33
    %v45 = vunpack.c.l.bf16 %v34
    %v46 = vunpack.c.h.bf16 %v34
    %v47 = vld [vmem:[%s1] sm:$0x3f]
    %v49 = vlaneseq
    %v50 = vshrl.u32 %v49, 7
    %v51 = vsub.s32 0, %v50
    %v52 = vrot.slane %v47, %v51
    %v53 = vlaneseq
    %v54 = vshrl.u32 %v53, 7
    %v55 = vsub.s32 1, %v54
    %v56 = vrot.slane %v47, %v55
    %v57 = vlaneseq
    %v58 = vshrl.u32 %v57, 7
    %v59 = vsub.s32 2, %v58
    %v60 = vrot.slane %v47, %v59
    %v61 = vlaneseq
    %v62 = vshrl.u32 %v61, 7
    %v63 = vsub.s32 3, %v62
    %v64 = vrot.slane %v47, %v63
    %v65 = vlaneseq
    %v66 = vshrl.u32 %v65, 7
    %v67 = vsub.s32 4, %v66
    %v68 = vrot.slane %v47, %v67
    %v69 = vlaneseq
    %v70 = vshrl.u32 %v69, 7
    %v71 = vsub.s32 5, %v70
    %v72 = vrot.slane %v47, %v71
    %v79 = vmul.f32 %v35, %v52
    %v80 = vmul.f32 %v36, %v56
    %v81 = vmul.f32 %v37, %v60
    %v82 = vmul.f32 %v38, %v64
    %v83 = vmul.f32 %v39, %v68
    %v84 = vmul.f32 %v40, %v72
    %v85 = vmul.f32 %v41, %v52
    %v86 = vmul.f32 %v42, %v56
    %v87 = vmul.f32 %v43, %v60
    %v88 = vmul.f32 %v44, %v64
    %v89 = vmul.f32 %v45, %v68
    %v90 = vmul.f32 %v46, %v72
    %v91 = vadd.f32 %v79, %v80
    %v92 = vadd.f32 %v91, %v81
    %v93 = vadd.f32 %v92, %v82
    %v94 = vadd.f32 %v93, %v83
    %v95 = vadd.f32 %v94, %v84
    %96 = vadd.xlane.f32.xlu0 %v95
    %v97 = vpop.xlane.xlu0 %96
    %v98 = vadd.f32 %v85, %v86
    %v99 = vadd.f32 %v98, %v87
    %v100 = vadd.f32 %v99, %v88
    %v101 = vadd.f32 %v100, %v89
    %v102 = vadd.f32 %v101, %v90
    %103 = vadd.xlane.f32.xlu0 %v102
    %v104 = vpop.xlane.xlu0 %103
    %s105 = sld [smem:[#allocation2]]
    %v106 = vstv %s105
    %v107 = vadd.f32 %v97, %v106
    %v108 = vadd.f32 %v104, %v106
    %v109 = vxor.u32 %v107, 2147483648
    %v110 = vxor.u32 %v108, 2147483648
    %v111 = vmul.f32 %v109, 1.442695
    %v112 = vpow.pop %v111
    %v113 = vmul.f32 %v110, 1.442695
    %v114 = vpow.pop %v113
    %v115 = vadd.f32 %v112, 1.0
    %v116 = vadd.f32 %v114, 1.0
    %v117 = vrcp.pop %v115
    %v118 = vmul.f32 1.0, %v117
    %v119 = vrcp.pop %v116
    %v120 = vmul.f32 1.0, %v119
    %vm121 = vcmask 7168
    %122 = vst.msk [vmem:[%s3] sm:$0xff] %vm121, %v118
    %123 = vst.msk [vmem:[%s3 + $0x8] sm:$0xff] %vm121, %v120
    // Predicated region
    $region18: #{tpu_custom_call.1} parent=1 // pred_check
      _
    $region19: #{tpu_custom_call.1} parent=1 // pred_check_branch
      %125 = sbr.rel (0) target = $region21
    $region20: #{tpu_custom_call.1} parent=1 // pred_region
      _
    $region21: #{tpu_custom_call.1} parent=1 // pred_fallthru
      _
    // Predicated region
    $region22: #{tpu_custom_call.1} parent=1 // pred_check
      _
    $region23: #{tpu_custom_call.1} parent=1 // pred_check_branch
      %127 = sbr.rel (0) target = $region25
    $region24: #{tpu_custom_call.1} parent=1 // pred_region
      _
    $region25: #{tpu_custom_call.1} parent=1 // pred_fallthru
      _
    %128 = vsyncpa [#allocation4], 1

</llo_original>
